<compile_context>
chip_gen: v6e
topology: v6e:2x2x1
jax: 0.10.0
libtpu: 0.0.40
codegen_flags: <defaults>
</compile_context>

<pallas_src>
import functools

import jax
import jax.numpy as jnp
from jax import lax
from jax.experimental import pallas as pl
from jax.experimental.pallas import tpu as pltpu

# LIF parameters from ModularUnit.__init__ (norse defaults: dt=1e-3, heaviside threshold)
DT = 1e-3
TAU_MEM_INV = 1.0 / 20.0
TAU_SYN_INV = 1.0 / 10.0
V_LEAK = -70.0
V_TH = -55.0
V_RESET = -70.0

_ROWS = 8  # sublane tile: one full (8, Np) output store per inner block


def _lif_recurrent_kernel(x_ref, w_in_t_ref, w_rec_t_ref, out_ref,
                          z_scr, v_scr, i_scr, drive_scr):
    """x_ref/out_ref: [Tt, Np] time-tile.  w_*_t_ref: [Np, Np] transposed weights.
    z/v/i scratch: [1, Np] LIF state persisting across grid tiles.
    drive_scr: [Tt, Np] hoisted input drive for the current tile."""
    Tt = x_ref.shape[0]
    tile = pl.program_id(0)

    # Initial state (norse LIFRecurrent): z = 0, v = v_leak, i = 0.
    @pl.when(tile == 0)
    def _():
        z_scr[...] = jnp.zeros_like(z_scr)
        v_scr[...] = jnp.full_like(v_scr, V_LEAK)
        i_scr[...] = jnp.zeros_like(i_scr)

    # Hoisted, batched input drive for the whole tile: one big MXU matmul instead of
    # Tt tiny M=1 matmuls inside the serial recurrence.
    drive_scr[...] = jnp.dot(x_ref[...], w_in_t_ref[...],
                             preferred_element_type=jnp.float32)

    n_blocks = Tt // _ROWS

    def block_step(b, carry):
        z, v, i = carry                                     # each [1, Np], in registers
        base = pl.multiple_of(b * _ROWS, _ROWS)
        drive_blk = drive_scr[pl.ds(base, _ROWS), :]        # one full (8, Np) tile load
        rows = []
        for r in range(_ROWS):                              # fully unrolled inner loop
            # Recurrent drive FIRST: depends only on z from the previous step, so the
            # M=1 MXU matmul is issued early and its latency is hidden under the VPU
            # decay / threshold / reset ops below.  W_rec^T is read from its VMEM ref
            # here (not hoisted into a loop-carried value) to avoid pinning Np/8 vregs
            # across the unrolled body.
            rec = jnp.dot(z, w_rec_t_ref[...], preferred_element_type=jnp.float32)
            # membrane / synaptic current decay
            v_dec = v + DT * TAU_MEM_INV * ((V_LEAK - v) + i)
            i_dec = i + (-DT * TAU_SYN_INV) * i
            # spike + reset
            z_new = (v_dec - V_TH > 0.0).astype(jnp.float32)
            v = (1.0 - z_new) * v_dec + z_new * V_RESET
            # current jumps: precomputed input drive + recurrent drive (previous z)
            i = i_dec + drive_blk[r:r + 1, :] + rec
            z = z_new
            rows.append(z_new)
        # one unmasked full-tile store instead of 8 sublane-masked row stores
        out_ref[pl.ds(base, _ROWS), :] = jnp.concatenate(rows, axis=0)
        return z, v, i

    z, v, i = lax.fori_loop(0, n_blocks, block_step,
                            (z_scr[...], v_scr[...], i_scr[...]),
                            unroll=min(2, n_blocks))
    # Persist state for the next time-tile of the grid.
    z_scr[...] = z
    v_scr[...] = v
    i_scr[...] = i


def _round_up(x, m):
    return ((x + m - 1) // m) * m


def _cdiv(a, b):
    return -(-a // b)


def prepare_weights(w_in, w_rec):
    """Transpose + zero-pad the [out, in] PyTorch-layout weights ONCE (module-init time),
    so the per-forward path does no layout work on the weights."""
    n = w_in.shape[0]
    np_ = max(128, _round_up(n, 128))
    w_in_t = jnp.zeros((np_, np_), jnp.float32).at[:n, :n].set(
        jnp.asarray(w_in, jnp.float32).T)
    w_rec_t = jnp.zeros((np_, np_), jnp.float32).at[:n, :n].set(
        jnp.asarray(w_rec, jnp.float32).T)
    return w_in_t, w_rec_t


def _estimate_vmem_bytes(tile_t, n_p):
    io = 2 * 2 * tile_t * n_p * 4          # x + out blocks, double-buffered
    weights = 2 * 2 * n_p * n_p * 4        # two resident weights, default double-buffered
    scratch = (tile_t + 3) * n_p * 4       # drive scratch + z/v/i state
    return io + weights + scratch


@functools.partial(jax.jit, static_argnames=("tile_t",))
def _lif_pallas(x_p, w_in_t, w_rec_t, tile_t):
    Tp, Np = x_p.shape
    grid = (Tp // tile_t,)

    # Only request extra scoped VMEM when the footprint exceeds the smallest default
    # scoped limit (16 MiB on v5e); otherwise leave the compiler default alone.
    est = _estimate_vmem_bytes(tile_t, Np)
    vmem_limit = None
    if est > 12 * 1024 * 1024:
        vmem_limit = min(int(est * 1.25) + (2 << 20), 64 * 1024 * 1024)

    return pl.pallas_call(
        _lif_recurrent_kernel,
        out_shape=jax.ShapeDtypeStruct((Tp, Np), jnp.float32),
        grid=grid,
        in_specs=[
            pl.BlockSpec((tile_t, Np), lambda i: (i, 0)),   # x: tiled over time
            pl.BlockSpec((Np, Np), lambda i: (0, 0)),       # W_in^T: resident
            pl.BlockSpec((Np, Np), lambda i: (0, 0)),       # W_rec^T: resident
        ],
        out_specs=pl.BlockSpec((tile_t, Np), lambda i: (i, 0)),
        scratch_shapes=[
            pltpu.VMEM((1, Np), jnp.float32),        # z state
            pltpu.VMEM((1, Np), jnp.float32),        # v state
            pltpu.VMEM((1, Np), jnp.float32),        # i state
            pltpu.VMEM((tile_t, Np), jnp.float32),   # hoisted input drive for the tile
        ],
        compiler_params=pltpu.CompilerParams(
            dimension_semantics=("arbitrary",),      # time recurrence is serial
            vmem_limit_bytes=vmem_limit),
    )(x_p, w_in_t, w_rec_t)


def _choose_tiles(T, Np, max_tile_t):
    """Pick a time-tile that is a multiple of 8, fits a modest VMEM budget, and wastes
    at most a few padded timesteps (instead of up to tile_t-1 with naive rounding)."""
    T8 = _round_up(T, _ROWS)
    # VMEM-aware cap: x/out double-buffered + drive scratch ~ 5 * 4 bytes per element.
    cap = max(_ROWS, ((6 * 1024 * 1024) // (20 * Np)) // _ROWS * _ROWS)
    max_tile_t = max(_ROWS, min(max_tile_t, cap))
    n_tiles = _cdiv(T8, max_tile_t)
    tile_t = _round_up(_cdiv(T8, n_tiles), _ROWS)
    return tile_t, tile_t * n_tiles


def modular_unit_forward(spikes_in, w_in_t, w_rec_t, *, max_tile_t=512):
    """spikes_in: [T, N] float32 spike train.  w_in_t / w_rec_t: prepared via
    prepare_weights().  Returns output spikes [T, N] float32."""
    T, N = spikes_in.shape
    Np = w_in_t.shape[0]
    tile_t, Tp = _choose_tiles(T, Np, max_tile_t)

    # Padded neurons have zero weights / zero input and never spike; padded timesteps
    # are sliced off (note: they would keep evolving any returned final state).
    x_p = jnp.zeros((Tp, Np), jnp.float32).at[:T, :N].set(
        spikes_in.astype(jnp.float32))

    out_p = _lif_pallas(x_p, w_in_t, w_rec_t, tile_t)
    return out_p[:T, :N]


def _reference_forward(spikes_in, w_in, w_rec):
    """Pure-JAX reference of the same LIF recurrence (sanity check)."""
    T, N = spikes_in.shape
    z = jnp.zeros((N,), jnp.float32)
    v = jnp.full((N,), V_LEAK, jnp.float32)
    i = jnp.zeros((N,), jnp.float32)
    outs = []
    for t in range(T):
        v_dec = v + DT * TAU_MEM_INV * ((V_LEAK - v) + i)
        i_dec = i - DT * TAU_SYN_INV * i
        z_new = (v_dec - V_TH > 0.0).astype(jnp.float32)
        v = (1.0 - z_new) * v_dec + z_new * V_RESET
        i = i_dec + spikes_in[t] @ w_in.T + z @ w_rec.T
        z = z_new
        outs.append(z_new)
    return jnp.stack(outs)


if __name__ == "__main__":
    neurons = 32
    timesteps = 8

    key = jax.random.PRNGKey(0)
    k_x, k_in, k_rec, k_x2 = jax.random.split(key, 4)

    # deterministic synthetic parameters (same shapes/scale as norse LIFRecurrent init)
    scale = jnp.sqrt(2.0 / neurons)
    w_in = jax.random.normal(k_in, (neurons, neurons), jnp.float32) * scale    # [out, in]
    w_rec = jax.random.normal(k_rec, (neurons, neurons), jnp.float32) * scale  # [out, in]

    # input spike train, [timesteps, neurons] of {0., 1.}
    spikes_in = jax.random.bernoulli(k_x, 0.3, (timesteps, neurons)).astype(jnp.float32)

    # one-time weight preparation (module-init analogue)
    w_in_t, w_rec_t = prepare_weights(w_in, w_rec)

    # Case 1: module-native shape [timesteps, neurons] (single time-tile).
    out = modular_unit_forward(spikes_in, w_in_t, w_rec_t)
    out = jax.block_until_ready(out)
    ref = _reference_forward(spikes_in, w_in, w_rec)
    assert out.shape == (timesteps, neurons)
    assert jnp.allclose(out, ref, atol=1e-5), "mismatch vs pure-JAX LIF reference (T=8)"

    # Case 2: longer sequence exercising multiple grid tiles, cross-tile state carry,
    # and the new low-waste time-padding policy (T=40 -> 3 tiles of 16, 8 padded steps).
    T2 = 40
    spikes_in2 = jax.random.bernoulli(k_x2, 0.3, (T2, neurons)).astype(jnp.float32)
    out2 = modular_unit_forward(spikes_in2, w_in_t, w_rec_t, max_tile_t=16)
    out2 = jax.block_until_ready(out2)
    ref2 = _reference_forward(spikes_in2, w_in, w_rec)
    assert out2.shape == (T2, neurons)
    assert jnp.allclose(out2, ref2, atol=1e-5), "mismatch vs pure-JAX LIF reference (T=40)"

    print("KERNEL_OK")
</pallas_src>

<mosaic_0001>
module attributes {stable_mosaic.version = 11 : i64} {
  func.func @_lif_recurrent_kernel(%arg0: i32, %arg1: memref<8x128xf32, #tpu.memory_space<vmem>>, %arg2: memref<128x128xf32, #tpu.memory_space<vmem>>, %arg3: memref<128x128xf32, #tpu.memory_space<vmem>>, %arg4: memref<8x128xf32, #tpu.memory_space<vmem>>, %arg5: memref<1x128xf32, #tpu.memory_space<vmem>>, %arg6: memref<1x128xf32, #tpu.memory_space<vmem>>, %arg7: memref<1x128xf32, #tpu.memory_space<vmem>>, %arg8: memref<8x128xf32, #tpu.memory_space<vmem>>) attributes {dimension_semantics = [#tpu.dimension_semantics<arbitrary>], iteration_bounds = array<i64: 1>, scalar_prefetch = 0 : i64, scratch_operands = 4 : i64, tpu.core_type = #tpu.core_type<tc>, window_params = [{transform_indices = @transform_0, window_bounds = array<i64: 8, 128>}, {pipeline_mode = #tpu.pipeline_mode<synchronous>, transform_indices = @transform_1, window_bounds = array<i64: 128, 128>}, {pipeline_mode = #tpu.pipeline_mode<synchronous>, transform_indices = @transform_2, window_bounds = array<i64: 128, 128>}, {transform_indices = @transform_3, window_bounds = array<i64: 8, 128>}]} {
    %c0_i32 = arith.constant 0 : i32
    %0 = arith.cmpi eq, %arg0, %c0_i32 : i32
    %1 = arith.extui %0 : i1 to i32
    %c0_i32_0 = arith.constant 0 : i32
    %2 = arith.cmpi ne, %1, %c0_i32_0 : i32
    scf.if %2 {
      %cst_101 = arith.constant 0.000000e+00 : f32
      %228 = vector.broadcast %cst_101 : f32 to vector<1x128xf32>
      %c0_102 = arith.constant 0 : index
      %c0_103 = arith.constant 0 : index
      %229 = vector.load %arg5[%c0_102, %c0_103] : memref<1x128xf32, #tpu.memory_space<vmem>>, vector<1x128xf32>
      tpu.vector_store %arg5[%c0_102, %c0_103], %228 {strides = array<i32>} : memref<1x128xf32, #tpu.memory_space<vmem>>, vector<1x128xf32>,
      %cst_104 = arith.constant -7.000000e+01 : f32
      %230 = vector.broadcast %cst_104 : f32 to vector<1x128xf32>
      %c0_105 = arith.constant 0 : index
      %c0_106 = arith.constant 0 : index
      %231 = vector.load %arg6[%c0_105, %c0_106] : memref<1x128xf32, #tpu.memory_space<vmem>>, vector<1x128xf32>
      tpu.vector_store %arg6[%c0_105, %c0_106], %230 {strides = array<i32>} : memref<1x128xf32, #tpu.memory_space<vmem>>, vector<1x128xf32>,
      %cst_107 = arith.constant 0.000000e+00 : f32
      %232 = vector.broadcast %cst_107 : f32 to vector<1x128xf32>
      %c0_108 = arith.constant 0 : index
      %c0_109 = arith.constant 0 : index
      %233 = vector.load %arg7[%c0_108, %c0_109] : memref<1x128xf32, #tpu.memory_space<vmem>>, vector<1x128xf32>
      tpu.vector_store %arg7[%c0_108, %c0_109], %232 {strides = array<i32>} : memref<1x128xf32, #tpu.memory_space<vmem>>, vector<1x128xf32>,
    } else {
    }
    %c0 = arith.constant 0 : index
    %c0_1 = arith.constant 0 : index
    %3 = vector.load %arg1[%c0, %c0_1] : memref<8x128xf32, #tpu.memory_space<vmem>>, vector<8x128xf32>
    %c0_2 = arith.constant 0 : index
    %c0_3 = arith.constant 0 : index
    %4 = vector.load %arg2[%c0_2, %c0_3] : memref<128x128xf32, #tpu.memory_space<vmem>>, vector<128x128xf32>
    %cst = arith.constant dense<0.000000e+00> : vector<8x128xf32>
    %5 = tpu.matmul %3, %4, %cst {dimension_numbers = #tpu.dot_dimension_numbers<[1], [0], [0], [1], [0, 0, 1, 1], [], []>} : vector<8x128xf32>, vector<128x128xf32>, vector<8x128xf32> -> vector<8x128xf32>
    %c0_4 = arith.constant 0 : index
    %c0_5 = arith.constant 0 : index
    %6 = vector.load %arg8[%c0_4, %c0_5] : memref<8x128xf32, #tpu.memory_space<vmem>>, vector<8x128xf32>
    tpu.vector_store %arg8[%c0_4, %c0_5], %5 {strides = array<i32>} : memref<8x128xf32, #tpu.memory_space<vmem>>, vector<8x128xf32>,
    %c0_6 = arith.constant 0 : index
    %c0_7 = arith.constant 0 : index
    %7 = vector.load %arg5[%c0_6, %c0_7] : memref<1x128xf32, #tpu.memory_space<vmem>>, vector<1x128xf32>
    %c0_8 = arith.constant 0 : index
    %c0_9 = arith.constant 0 : index
    %8 = vector.load %arg6[%c0_8, %c0_9] : memref<1x128xf32, #tpu.memory_space<vmem>>, vector<1x128xf32>
    %c0_10 = arith.constant 0 : index
    %c0_11 = arith.constant 0 : index
    %9 = vector.load %arg7[%c0_10, %c0_11] : memref<1x128xf32, #tpu.memory_space<vmem>>, vector<1x128xf32>
    %c0_i32_12 = arith.constant 0 : i32
    %c8_i32 = arith.constant 8 : i32
    %10 = arith.muli %c0_i32_12, %c8_i32 : i32
    %11 = tpu.assume_multiple %10, 8 : i32
    %12 = arith.index_cast %11 : i32 to index
    %c0_13 = arith.constant 0 : index
    %13 = vector.load %arg8[%12, %c0_13] : memref<8x128xf32, #tpu.memory_space<vmem>>, vector<8x128xf32>
    %c0_14 = arith.constant 0 : index
    %c0_15 = arith.constant 0 : index
    %14 = vector.load %arg3[%c0_14, %c0_15] : memref<128x128xf32, #tpu.memory_space<vmem>>, vector<128x128xf32>
    %cst_16 = arith.constant dense<0.000000e+00> : vector<1x128xf32>
    %15 = tpu.matmul %7, %14, %cst_16 {dimension_numbers = #tpu.dot_dimension_numbers<[1], [0], [0], [1], [0, 0, 1, 1], [], []>} : vector<1x128xf32>, vector<128x128xf32>, vector<1x128xf32> -> vector<1x128xf32>
    %cst_17 = arith.constant -7.000000e+01 : f32
    %16 = vector.broadcast %cst_17 : f32 to vector<1x128xf32>
    %17 = arith.subf %16, %8 : vector<1x128xf32>
    %18 = arith.addf %17, %9 : vector<1x128xf32>
    %cst_18 = arith.constant 5.000000e-05 : f32
    %19 = vector.broadcast %cst_18 : f32 to vector<1x128xf32>
    %20 = arith.mulf %19, %18 : vector<1x128xf32>
    %21 = arith.addf %8, %20 : vector<1x128xf32>
    %cst_19 = arith.constant -9.99999974E-5 : f32
    %22 = vector.broadcast %cst_19 : f32 to vector<1x128xf32>
    %23 = arith.mulf %22, %9 : vector<1x128xf32>
    %24 = arith.addf %9, %23 : vector<1x128xf32>
    %cst_20 = arith.constant -5.500000e+01 : f32
    %25 = vector.broadcast %cst_20 : f32 to vector<1x128xf32>
    %26 = arith.subf %21, %25 : vector<1x128xf32>
    %cst_21 = arith.constant 0.000000e+00 : f32
    %27 = vector.broadcast %cst_21 : f32 to vector<1x128xf32>
    %28 = arith.cmpf ogt, %26, %27 : vector<1x128xf32>
    %29 = arith.extui %28 : vector<1x128xi1> to vector<1x128xi32>
    %30 = arith.sitofp %29 : vector<1x128xi32> to vector<1x128xf32>
    %cst_22 = arith.constant 1.000000e+00 : f32
    %31 = vector.broadcast %cst_22 : f32 to vector<1x128xf32>
    %32 = arith.subf %31, %30 : vector<1x128xf32>
    %33 = arith.mulf %32, %21 : vector<1x128xf32>
    %cst_23 = arith.constant -7.000000e+01 : f32
    %34 = vector.broadcast %cst_23 : f32 to vector<1x128xf32>
    %35 = arith.mulf %30, %34 : vector<1x128xf32>
    %36 = arith.addf %33, %35 : vector<1x128xf32>
    %37 = vector.extract_strided_slice %13 {offsets = [0, 0], sizes = [1, 128], strides = [1, 1]} : vector<8x128xf32> to vector<1x128xf32>
    %38 = arith.addf %24, %37 : vector<1x128xf32>
    %39 = arith.addf %38, %15 : vector<1x128xf32>
    %c0_24 = arith.constant 0 : index
    %c0_25 = arith.constant 0 : index
    %40 = vector.load %arg3[%c0_24, %c0_25] : memref<128x128xf32, #tpu.memory_space<vmem>>, vector<128x128xf32>
    %cst_26 = arith.constant dense<0.000000e+00> : vector<1x128xf32>
    %41 = tpu.matmul %30, %40, %cst_26 {dimension_numbers = #tpu.dot_dimension_numbers<[1], [0], [0], [1], [0, 0, 1, 1], [], []>} : vector<1x128xf32>, vector<128x128xf32>, vector<1x128xf32> -> vector<1x128xf32>
    %cst_27 = arith.constant -7.000000e+01 : f32
    %42 = vector.broadcast %cst_27 : f32 to vector<1x128xf32>
    %43 = arith.subf %42, %36 : vector<1x128xf32>
    %44 = arith.addf %43, %39 : vector<1x128xf32>
    %cst_28 = arith.constant 5.000000e-05 : f32
    %45 = vector.broadcast %cst_28 : f32 to vector<1x128xf32>
    %46 = arith.mulf %45, %44 : vector<1x128xf32>
    %47 = arith.addf %36, %46 : vector<1x128xf32>
    %cst_29 = arith.constant -9.99999974E-5 : f32
    %48 = vector.broadcast %cst_29 : f32 to vector<1x128xf32>
    %49 = arith.mulf %48, %39 : vector<1x128xf32>
    %50 = arith.addf %39, %49 : vector<1x128xf32>
    %cst_30 = arith.constant -5.500000e+01 : f32
    %51 = vector.broadcast %cst_30 : f32 to vector<1x128xf32>
    %52 = arith.subf %47, %51 : vector<1x128xf32>
    %cst_31 = arith.constant 0.000000e+00 : f32
    %53 = vector.broadcast %cst_31 : f32 to vector<1x128xf32>
    %54 = arith.cmpf ogt, %52, %53 : vector<1x128xf32>
    %55 = arith.extui %54 : vector<1x128xi1> to vector<1x128xi32>
    %56 = arith.sitofp %55 : vector<1x128xi32> to vector<1x128xf32>
    %cst_32 = arith.constant 1.000000e+00 : f32
    %57 = vector.broadcast %cst_32 : f32 to vector<1x128xf32>
    %58 = arith.subf %57, %56 : vector<1x128xf32>
    %59 = arith.mulf %58, %47 : vector<1x128xf32>
    %cst_33 = arith.constant -7.000000e+01 : f32
    %60 = vector.broadcast %cst_33 : f32 to vector<1x128xf32>
    %61 = arith.mulf %56, %60 : vector<1x128xf32>
    %62 = arith.addf %59, %61 : vector<1x128xf32>
    %63 = vector.extract_strided_slice %13 {offsets = [1, 0], sizes = [1, 128], strides = [1, 1]} : vector<8x128xf32> to vector<1x128xf32>
    %64 = arith.addf %50, %63 : vector<1x128xf32>
    %65 = arith.addf %64, %41 : vector<1x128xf32>
    %c0_34 = arith.constant 0 : index
    %c0_35 = arith.constant 0 : index
    %66 = vector.load %arg3[%c0_34, %c0_35] : memref<128x128xf32, #tpu.memory_space<vmem>>, vector<128x128xf32>
    %cst_36 = arith.constant dense<0.000000e+00> : vector<1x128xf32>
    %67 = tpu.matmul %56, %66, %cst_36 {dimension_numbers = #tpu.dot_dimension_numbers<[1], [0], [0], [1], [0, 0, 1, 1], [], []>} : vector<1x128xf32>, vector<128x128xf32>, vector<1x128xf32> -> vector<1x128xf32>
    %cst_37 = arith.constant -7.000000e+01 : f32
    %68 = vector.broadcast %cst_37 : f32 to vector<1x128xf32>
    %69 = arith.subf %68, %62 : vector<1x128xf32>
    %70 = arith.addf %69, %65 : vector<1x128xf32>
    %cst_38 = arith.constant 5.000000e-05 : f32
    %71 = vector.broadcast %cst_38 : f32 to vector<1x128xf32>
    %72 = arith.mulf %71, %70 : vector<1x128xf32>
    %73 = arith.addf %62, %72 : vector<1x128xf32>
    %cst_39 = arith.constant -9.99999974E-5 : f32
    %74 = vector.broadcast %cst_39 : f32 to vector<1x128xf32>
    %75 = arith.mulf %74, %65 : vector<1x128xf32>
    %76 = arith.addf %65, %75 : vector<1x128xf32>
    %cst_40 = arith.constant -5.500000e+01 : f32
    %77 = vector.broadcast %cst_40 : f32 to vector<1x128xf32>
    %78 = arith.subf %73, %77 : vector<1x128xf32>
    %cst_41 = arith.constant 0.000000e+00 : f32
    %79 = vector.broadcast %cst_41 : f32 to vector<1x128xf32>
    %80 = arith.cmpf ogt, %78, %79 : vector<1x128xf32>
    %81 = arith.extui %80 : vector<1x128xi1> to vector<1x128xi32>
    %82 = arith.sitofp %81 : vector<1x128xi32> to vector<1x128xf32>
    %cst_42 = arith.constant 1.000000e+00 : f32
    %83 = vector.broadcast %cst_42 : f32 to vector<1x128xf32>
    %84 = arith.subf %83, %82 : vector<1x128xf32>
    %85 = arith.mulf %84, %73 : vector<1x128xf32>
    %cst_43 = arith.constant -7.000000e+01 : f32
    %86 = vector.broadcast %cst_43 : f32 to vector<1x128xf32>
    %87 = arith.mulf %82, %86 : vector<1x128xf32>
    %88 = arith.addf %85, %87 : vector<1x128xf32>
    %89 = vector.extract_strided_slice %13 {offsets = [2, 0], sizes = [1, 128], strides = [1, 1]} : vector<8x128xf32> to vector<1x128xf32>
    %90 = arith.addf %76, %89 : vector<1x128xf32>
    %91 = arith.addf %90, %67 : vector<1x128xf32>
    %c0_44 = arith.constant 0 : index
    %c0_45 = arith.constant 0 : index
    %92 = vector.load %arg3[%c0_44, %c0_45] : memref<128x128xf32, #tpu.memory_space<vmem>>, vector<128x128xf32>
    %cst_46 = arith.constant dense<0.000000e+00> : vector<1x128xf32>
    %93 = tpu.matmul %82, %92, %cst_46 {dimension_numbers = #tpu.dot_dimension_numbers<[1], [0], [0], [1], [0, 0, 1, 1], [], []>} : vector<1x128xf32>, vector<128x128xf32>, vector<1x128xf32> -> vector<1x128xf32>
    %cst_47 = arith.constant -7.000000e+01 : f32
    %94 = vector.broadcast %cst_47 : f32 to vector<1x128xf32>
    %95 = arith.subf %94, %88 : vector<1x128xf32>
    %96 = arith.addf %95, %91 : vector<1x128xf32>
    %cst_48 = arith.constant 5.000000e-05 : f32
    %97 = vector.broadcast %cst_48 : f32 to vector<1x128xf32>
    %98 = arith.mulf %97, %96 : vector<1x128xf32>
    %99 = arith.addf %88, %98 : vector<1x128xf32>
    %cst_49 = arith.constant -9.99999974E-5 : f32
    %100 = vector.broadcast %cst_49 : f32 to vector<1x128xf32>
    %101 = arith.mulf %100, %91 : vector<1x128xf32>
    %102 = arith.addf %91, %101 : vector<1x128xf32>
    %cst_50 = arith.constant -5.500000e+01 : f32
    %103 = vector.broadcast %cst_50 : f32 to vector<1x128xf32>
    %104 = arith.subf %99, %103 : vector<1x128xf32>
    %cst_51 = arith.constant 0.000000e+00 : f32
    %105 = vector.broadcast %cst_51 : f32 to vector<1x128xf32>
    %106 = arith.cmpf ogt, %104, %105 : vector<1x128xf32>
    %107 = arith.extui %106 : vector<1x128xi1> to vector<1x128xi32>
    %108 = arith.sitofp %107 : vector<1x128xi32> to vector<1x128xf32>
    %cst_52 = arith.constant 1.000000e+00 : f32
    %109 = vector.broadcast %cst_52 : f32 to vector<1x128xf32>
    %110 = arith.subf %109, %108 : vector<1x128xf32>
    %111 = arith.mulf %110, %99 : vector<1x128xf32>
    %cst_53 = arith.constant -7.000000e+01 : f32
    %112 = vector.broadcast %cst_53 : f32 to vector<1x128xf32>
    %113 = arith.mulf %108, %112 : vector<1x128xf32>
    %114 = arith.addf %111, %113 : vector<1x128xf32>
    %115 = vector.extract_strided_slice %13 {offsets = [3, 0], sizes = [1, 128], strides = [1, 1]} : vector<8x128xf32> to vector<1x128xf32>
    %116 = arith.addf %102, %115 : vector<1x128xf32>
    %117 = arith.addf %116, %93 : vector<1x128xf32>
    %c0_54 = arith.constant 0 : index
    %c0_55 = arith.constant 0 : index
    %118 = vector.load %arg3[%c0_54, %c0_55] : memref<128x128xf32, #tpu.memory_space<vmem>>, vector<128x128xf32>
    %cst_56 = arith.constant dense<0.000000e+00> : vector<1x128xf32>
    %119 = tpu.matmul %108, %118, %cst_56 {dimension_numbers = #tpu.dot_dimension_numbers<[1], [0], [0], [1], [0, 0, 1, 1], [], []>} : vector<1x128xf32>, vector<128x128xf32>, vector<1x128xf32> -> vector<1x128xf32>
    %cst_57 = arith.constant -7.000000e+01 : f32
    %120 = vector.broadcast %cst_57 : f32 to vector<1x128xf32>
    %121 = arith.subf %120, %114 : vector<1x128xf32>
    %122 = arith.addf %121, %117 : vector<1x128xf32>
    %cst_58 = arith.constant 5.000000e-05 : f32
    %123 = vector.broadcast %cst_58 : f32 to vector<1x128xf32>
    %124 = arith.mulf %123, %122 : vector<1x128xf32>
    %125 = arith.addf %114, %124 : vector<1x128xf32>
    %cst_59 = arith.constant -9.99999974E-5 : f32
    %126 = vector.broadcast %cst_59 : f32 to vector<1x128xf32>
    %127 = arith.mulf %126, %117 : vector<1x128xf32>
    %128 = arith.addf %117, %127 : vector<1x128xf32>
    %cst_60 = arith.constant -5.500000e+01 : f32
    %129 = vector.broadcast %cst_60 : f32 to vector<1x128xf32>
    %130 = arith.subf %125, %129 : vector<1x128xf32>
    %cst_61 = arith.constant 0.000000e+00 : f32
    %131 = vector.broadcast %cst_61 : f32 to vector<1x128xf32>
    %132 = arith.cmpf ogt, %130, %131 : vector<1x128xf32>
    %133 = arith.extui %132 : vector<1x128xi1> to vector<1x128xi32>
    %134 = arith.sitofp %133 : vector<1x128xi32> to vector<1x128xf32>
    %cst_62 = arith.constant 1.000000e+00 : f32
    %135 = vector.broadcast %cst_62 : f32 to vector<1x128xf32>
    %136 = arith.subf %135, %134 : vector<1x128xf32>
    %137 = arith.mulf %136, %125 : vector<1x128xf32>
    %cst_63 = arith.constant -7.000000e+01 : f32
    %138 = vector.broadcast %cst_63 : f32 to vector<1x128xf32>
    %139 = arith.mulf %134, %138 : vector<1x128xf32>
    %140 = arith.addf %137, %139 : vector<1x128xf32>
    %141 = vector.extract_strided_slice %13 {offsets = [4, 0], sizes = [1, 128], strides = [1, 1]} : vector<8x128xf32> to vector<1x128xf32>
    %142 = arith.addf %128, %141 : vector<1x128xf32>
    %143 = arith.addf %142, %119 : vector<1x128xf32>
    %c0_64 = arith.constant 0 : index
    %c0_65 = arith.constant 0 : index
    %144 = vector.load %arg3[%c0_64, %c0_65] : memref<128x128xf32, #tpu.memory_space<vmem>>, vector<128x128xf32>
    %cst_66 = arith.constant dense<0.000000e+00> : vector<1x128xf32>
    %145 = tpu.matmul %134, %144, %cst_66 {dimension_numbers = #tpu.dot_dimension_numbers<[1], [0], [0], [1], [0, 0, 1, 1], [], []>} : vector<1x128xf32>, vector<128x128xf32>, vector<1x128xf32> -> vector<1x128xf32>
    %cst_67 = arith.constant -7.000000e+01 : f32
    %146 = vector.broadcast %cst_67 : f32 to vector<1x128xf32>
    %147 = arith.subf %146, %140 : vector<1x128xf32>
    %148 = arith.addf %147, %143 : vector<1x128xf32>
    %cst_68 = arith.constant 5.000000e-05 : f32
    %149 = vector.broadcast %cst_68 : f32 to vector<1x128xf32>
    %150 = arith.mulf %149, %148 : vector<1x128xf32>
    %151 = arith.addf %140, %150 : vector<1x128xf32>
    %cst_69 = arith.constant -9.99999974E-5 : f32
    %152 = vector.broadcast %cst_69 : f32 to vector<1x128xf32>
    %153 = arith.mulf %152, %143 : vector<1x128xf32>
    %154 = arith.addf %143, %153 : vector<1x128xf32>
    %cst_70 = arith.constant -5.500000e+01 : f32
    %155 = vector.broadcast %cst_70 : f32 to vector<1x128xf32>
    %156 = arith.subf %151, %155 : vector<1x128xf32>
    %cst_71 = arith.constant 0.000000e+00 : f32
    %157 = vector.broadcast %cst_71 : f32 to vector<1x128xf32>
    %158 = arith.cmpf ogt, %156, %157 : vector<1x128xf32>
    %159 = arith.extui %158 : vector<1x128xi1> to vector<1x128xi32>
    %160 = arith.sitofp %159 : vector<1x128xi32> to vector<1x128xf32>
    %cst_72 = arith.constant 1.000000e+00 : f32
    %161 = vector.broadcast %cst_72 : f32 to vector<1x128xf32>
    %162 = arith.subf %161, %160 : vector<1x128xf32>
    %163 = arith.mulf %162, %151 : vector<1x128xf32>
    %cst_73 = arith.constant -7.000000e+01 : f32
    %164 = vector.broadcast %cst_73 : f32 to vector<1x128xf32>
    %165 = arith.mulf %160, %164 : vector<1x128xf32>
    %166 = arith.addf %163, %165 : vector<1x128xf32>
    %167 = vector.extract_strided_slice %13 {offsets = [5, 0], sizes = [1, 128], strides = [1, 1]} : vector<8x128xf32> to vector<1x128xf32>
    %168 = arith.addf %154, %167 : vector<1x128xf32>
    %169 = arith.addf %168, %145 : vector<1x128xf32>
    %c0_74 = arith.constant 0 : index
    %c0_75 = arith.constant 0 : index
    %170 = vector.load %arg3[%c0_74, %c0_75] : memref<128x128xf32, #tpu.memory_space<vmem>>, vector<128x128xf32>
    %cst_76 = arith.constant dense<0.000000e+00> : vector<1x128xf32>
    %171 = tpu.matmul %160, %170, %cst_76 {dimension_numbers = #tpu.dot_dimension_numbers<[1], [0], [0], [1], [0, 0, 1, 1], [], []>} : vector<1x128xf32>, vector<128x128xf32>, vector<1x128xf32> -> vector<1x128xf32>
    %cst_77 = arith.constant -7.000000e+01 : f32
    %172 = vector.broadcast %cst_77 : f32 to vector<1x128xf32>
    %173 = arith.subf %172, %166 : vector<1x128xf32>
    %174 = arith.addf %173, %169 : vector<1x128xf32>
    %cst_78 = arith.constant 5.000000e-05 : f32
    %175 = vector.broadcast %cst_78 : f32 to vector<1x128xf32>
    %176 = arith.mulf %175, %174 : vector<1x128xf32>
    %177 = arith.addf %166, %176 : vector<1x128xf32>
    %cst_79 = arith.constant -9.99999974E-5 : f32
    %178 = vector.broadcast %cst_79 : f32 to vector<1x128xf32>
    %179 = arith.mulf %178, %169 : vector<1x128xf32>
    %180 = arith.addf %169, %179 : vector<1x128xf32>
    %cst_80 = arith.constant -5.500000e+01 : f32
    %181 = vector.broadcast %cst_80 : f32 to vector<1x128xf32>
    %182 = arith.subf %177, %181 : vector<1x128xf32>
    %cst_81 = arith.constant 0.000000e+00 : f32
    %183 = vector.broadcast %cst_81 : f32 to vector<1x128xf32>
    %184 = arith.cmpf ogt, %182, %183 : vector<1x128xf32>
    %185 = arith.extui %184 : vector<1x128xi1> to vector<1x128xi32>
    %186 = arith.sitofp %185 : vector<1x128xi32> to vector<1x128xf32>
    %cst_82 = arith.constant 1.000000e+00 : f32
    %187 = vector.broadcast %cst_82 : f32 to vector<1x128xf32>
    %188 = arith.subf %187, %186 : vector<1x128xf32>
    %189 = arith.mulf %188, %177 : vector<1x128xf32>
    %cst_83 = arith.constant -7.000000e+01 : f32
    %190 = vector.broadcast %cst_83 : f32 to vector<1x128xf32>
    %191 = arith.mulf %186, %190 : vector<1x128xf32>
    %192 = arith.addf %189, %191 : vector<1x128xf32>
    %193 = vector.extract_strided_slice %13 {offsets = [6, 0], sizes = [1, 128], strides = [1, 1]} : vector<8x128xf32> to vector<1x128xf32>
    %194 = arith.addf %180, %193 : vector<1x128xf32>
    %195 = arith.addf %194, %171 : vector<1x128xf32>
    %c0_84 = arith.constant 0 : index
    %c0_85 = arith.constant 0 : index
    %196 = vector.load %arg3[%c0_84, %c0_85] : memref<128x128xf32, #tpu.memory_space<vmem>>, vector<128x128xf32>
    %cst_86 = arith.constant dense<0.000000e+00> : vector<1x128xf32>
    %197 = tpu.matmul %186, %196, %cst_86 {dimension_numbers = #tpu.dot_dimension_numbers<[1], [0], [0], [1], [0, 0, 1, 1], [], []>} : vector<1x128xf32>, vector<128x128xf32>, vector<1x128xf32> -> vector<1x128xf32>
    %cst_87 = arith.constant -7.000000e+01 : f32
    %198 = vector.broadcast %cst_87 : f32 to vector<1x128xf32>
    %199 = arith.subf %198, %192 : vector<1x128xf32>
    %200 = arith.addf %199, %195 : vector<1x128xf32>
    %cst_88 = arith.constant 5.000000e-05 : f32
    %201 = vector.broadcast %cst_88 : f32 to vector<1x128xf32>
    %202 = arith.mulf %201, %200 : vector<1x128xf32>
    %203 = arith.addf %192, %202 : vector<1x128xf32>
    %cst_89 = arith.constant -9.99999974E-5 : f32
    %204 = vector.broadcast %cst_89 : f32 to vector<1x128xf32>
    %205 = arith.mulf %204, %195 : vector<1x128xf32>
    %206 = arith.addf %195, %205 : vector<1x128xf32>
    %cst_90 = arith.constant -5.500000e+01 : f32
    %207 = vector.broadcast %cst_90 : f32 to vector<1x128xf32>
    %208 = arith.subf %203, %207 : vector<1x128xf32>
    %cst_91 = arith.constant 0.000000e+00 : f32
    %209 = vector.broadcast %cst_91 : f32 to vector<1x128xf32>
    %210 = arith.cmpf ogt, %208, %209 : vector<1x128xf32>
    %211 = arith.extui %210 : vector<1x128xi1> to vector<1x128xi32>
    %212 = arith.sitofp %211 : vector<1x128xi32> to vector<1x128xf32>
    %cst_92 = arith.constant 1.000000e+00 : f32
    %213 = vector.broadcast %cst_92 : f32 to vector<1x128xf32>
    %214 = arith.subf %213, %212 : vector<1x128xf32>
    %215 = arith.mulf %214, %203 : vector<1x128xf32>
    %cst_93 = arith.constant -7.000000e+01 : f32
    %216 = vector.broadcast %cst_93 : f32 to vector<1x128xf32>
    %217 = arith.mulf %212, %216 : vector<1x128xf32>
    %218 = arith.addf %215, %217 : vector<1x128xf32>
    %219 = vector.extract_strided_slice %13 {offsets = [7, 0], sizes = [1, 128], strides = [1, 1]} : vector<8x128xf32> to vector<1x128xf32>
    %220 = arith.addf %206, %219 : vector<1x128xf32>
    %221 = arith.addf %220, %197 : vector<1x128xf32>
    %222 = tpu.concatenate %30, %56, %82, %108, %134, %160, %186, %212 in 0 : vector<1x128xf32>, vector<1x128xf32>, vector<1x128xf32>, vector<1x128xf32>, vector<1x128xf32>, vector<1x128xf32>, vector<1x128xf32>, vector<1x128xf32> -> vector<8x128xf32>
    %223 = arith.index_cast %11 : i32 to index
    %c0_94 = arith.constant 0 : index
    %224 = vector.load %arg4[%223, %c0_94] : memref<8x128xf32, #tpu.memory_space<vmem>>, vector<8x128xf32>
    tpu.vector_store %arg4[%223, %c0_94], %222 {strides = array<i32>} : memref<8x128xf32, #tpu.memory_space<vmem>>, vector<8x128xf32>,
    %c1_i32 = arith.constant 1 : i32
    %c0_95 = arith.constant 0 : index
    %c0_96 = arith.constant 0 : index
    %225 = vector.load %arg5[%c0_95, %c0_96] : memref<1x128xf32, #tpu.memory_space<vmem>>, vector<1x128xf32>
    tpu.vector_store %arg5[%c0_95, %c0_96], %212 {strides = array<i32>} : memref<1x128xf32, #tpu.memory_space<vmem>>, vector<1x128xf32>,
    %c0_97 = arith.constant 0 : index
    %c0_98 = arith.constant 0 : index
    %226 = vector.load %arg6[%c0_97, %c0_98] : memref<1x128xf32, #tpu.memory_space<vmem>>, vector<1x128xf32>
    tpu.vector_store %arg6[%c0_97, %c0_98], %218 {strides = array<i32>} : memref<1x128xf32, #tpu.memory_space<vmem>>, vector<1x128xf32>,
    %c0_99 = arith.constant 0 : index
    %c0_100 = arith.constant 0 : index
    %227 = vector.load %arg7[%c0_99, %c0_100] : memref<1x128xf32, #tpu.memory_space<vmem>>, vector<1x128xf32>
    tpu.vector_store %arg7[%c0_99, %c0_100], %221 {strides = array<i32>} : memref<1x128xf32, #tpu.memory_space<vmem>>, vector<1x128xf32>,
    return
  }
  func.func @transform_0(%arg0: i32) -> (i32, i32) {
    %c0_i32 = arith.constant 0 : i32
    %c0_i32_0 = arith.constant 0 : i32
    return %arg0, %c0_i32 : i32, i32
  }
  func.func @transform_1(%arg0: i32) -> (i32, i32) {
    %c0_i32 = arith.constant 0 : i32
    %c0_i32_0 = arith.constant 0 : i32
    %c0_i32_1 = arith.constant 0 : i32
    return %c0_i32, %c0_i32_0 : i32, i32
  }
  func.func @transform_2(%arg0: i32) -> (i32, i32) {
    %c0_i32 = arith.constant 0 : i32
    %c0_i32_0 = arith.constant 0 : i32
    %c0_i32_1 = arith.constant 0 : i32
    return %c0_i32, %c0_i32_0 : i32, i32
  }
  func.func @transform_3(%arg0: i32) -> (i32, i32) {
    %c0_i32 = arith.constant 0 : i32
    %c0_i32_0 = arith.constant 0 : i32
    return %arg0, %c0_i32 : i32, i32
  }
}

</mosaic_0001>

<llo_original>
// kernel: _lif_pallas.1
$region0: #{_lif_pallas.1}
  #allocation0 [shape = 'u32[]', space=smem, size = 0x4, offset = 0x4, fixed_abs, tag = 'smem constant byte address 0x4 - core index']
  #allocation1 [shape = 'u32[144,128]{1,0:T(1,128)}', space=vmem, size = 0x12000, scoped, tag = 'internal scratch']
  #allocation2 [shape = 'f32[1,128]{1,0:T(1,128)}', space=vmem, size = 0x200, scoped, tag = 'scratch operand']
  #allocation3 [shape = 'f32[1,128]{1,0:T(1,128)}', space=vmem, size = 0x200, scoped, tag = 'scratch operand']
  #allocation4 [shape = 'f32[1,128]{1,0:T(1,128)}', space=vmem, size = 0x200, scoped, tag = 'scratch operand']
  #allocation5 [shape = 'f32[8,128]{1,0:T(8,128)}', space=vmem, size = 0x1000, scoped, tag = 'scratch operand']
  %s0 = inlined_call_operand.hbm [shape: f32[8,128], index: 0, kind: input, shape index: {}]
  %s1 = inlined_call_operand.hbm [shape: f32[128,128], index: 1, kind: input, shape index: {}]
  %s2 = inlined_call_operand.hbm [shape: f32[128,128], index: 2, kind: input, shape index: {}]
  %s3 = inlined_call_operand.hbm [shape: f32[8,128], index: 3, kind: output, shape index: {}]
  %s4 = sld [smem:[#allocation0]]
  $region38: #{_lif_pallas.1} parent=0
    _
  %s6 = ssub.s32 1, %s4
  %s7 = scalar_select 0, %s6, %s4
  $region1: #{_lif_pallas.1} parent=0
    #allocation6 [shape = 'u8[4096]{0}', space=vmem, size = 0x1000, scoped, tag = 'input window, operand 0, single buffered']
    #allocation7 [shape = 's32[1]{0}', space=sflag, size = 0x4, scoped, tag = 'scoped memory for _lif_pallas.1']
    #allocation8 [shape = 's32[1]{0}', space=sflag, size = 0x4, scoped, tag = 'scoped memory for _lif_pallas.1']
    #allocation9 [shape = 'u8[65536]{0}', space=vmem, size = 0x10000, scoped, tag = 'input window, operand 1, single buffered']
    #allocation10 [shape = 's32[1]{0}', space=sflag, size = 0x4, scoped, tag = 'scoped memory for _lif_pallas.1']
    #allocation11 [shape = 'u8[65536]{0}', space=vmem, size = 0x10000, scoped, tag = 'input window, operand 2, single buffered']
    #allocation12 [shape = 'u8[4096]{0}', space=vmem, size = 0x1000, scoped, tag = 'output window, operand 0, single buffered']
    %8 = vsyncpa [#allocation7], 0
    %9 = vsyncpa [#allocation10], 0
    %10 = vsyncpa [#allocation8], 0
    // Predicated region
    $region2: #{_lif_pallas.1} parent=1 // pred_check
      _
    $region3: #{_lif_pallas.1} parent=1 // pred_check_branch
      %12 = sbr.rel (0) target = $region5
    $region4: #{_lif_pallas.1} parent=1 // pred_region
      %s14 = ssub.s32 128, 128
      %15 = vsyncadd [#allocation7], %s14
      %s17 = sshll.u32 [#allocation6], 4
      %s18 = int_to_ptr.vmem [resolvable:$true] %s17
      %20 = dma.hbm_to_vmem [thread:$0]  %s0, 128, %s18, [#allocation7]
    $region5: #{_lif_pallas.1} parent=1 // pred_fallthru
      _
    // Predicated region
    $region6: #{_lif_pallas.1} parent=1 // pred_check
      _
    $region7: #{_lif_pallas.1} parent=1 // pred_check_branch
      %22 = sbr.rel (0) target = $region9
    $region8: #{_lif_pallas.1} parent=1 // pred_region
      %s24 = ssub.s32 2048, 2048
      %25 = vsyncadd [#allocation10], %s24
      %s26 = sshll.u32 [#allocation9], 4
      %s27 = int_to_ptr.vmem [resolvable:$true] %s26
      %32 = dma.hbm_to_vmem [thread:$0]  %s1, 2048, %s27, [#allocation10], 128, 128, 8
    $region9: #{_lif_pallas.1} parent=1 // pred_fallthru
      _
    // Predicated region
    $region10: #{_lif_pallas.1} parent=1 // pred_check
      _
    $region11: #{_lif_pallas.1} parent=1 // pred_check_branch
      %34 = sbr.rel (0) target = $region13
    $region12: #{_lif_pallas.1} parent=1 // pred_region
      %s36 = ssub.s32 2048, 2048
      %37 = vsyncadd [#allocation10], %s36
      %s38 = sshll.u32 [#allocation11], 4
      %s39 = int_to_ptr.vmem [resolvable:$true] %s38
      %44 = dma.hbm_to_vmem [thread:$0]  %s2, 2048, %s39, [#allocation10], 128, 128, 8
    $region13: #{_lif_pallas.1} parent=1 // pred_fallthru
      _
    // Predicated region
    $region14: #{_lif_pallas.1} parent=1 // pred_check
      _
    $region15: #{_lif_pallas.1} parent=1 // pred_check_branch
      %46 = sbr.rel (0) target = $region17
    $region16: #{_lif_pallas.1} parent=1 // pred_region
      %47 = dma.done [#allocation7], 128
    $region17: #{_lif_pallas.1} parent=1 // pred_fallthru
      _
    // Predicated region
    $region18: #{_lif_pallas.1} parent=1 // pred_check
      _
    $region19: #{_lif_pallas.1} parent=1 // pred_check_branch
      %49 = sbr.rel (0) target = $region21
    $region20: #{_lif_pallas.1} parent=1 // pred_region
      %50 = dma.done [#allocation10], 2048
    $region21: #{_lif_pallas.1} parent=1 // pred_fallthru
      _
    // Predicated region
    $region22: #{_lif_pallas.1} parent=1 // pred_check
      _
    $region23: #{_lif_pallas.1} parent=1 // pred_check_branch
      %52 = sbr.rel (0) target = $region25
    $region24: #{_lif_pallas.1} parent=1 // pred_region
      %53 = dma.done [#allocation10], 2048
    $region25: #{_lif_pallas.1} parent=1 // pred_fallthru
      _
    %p54 = scmp.eq.s32.totalorder 0, 0
    // Predicated region
    $region26: #{_lif_pallas.1} parent=1 // pred_check
      %p55 = pneg %p54
    $region27: #{_lif_pallas.1} parent=1 // pred_check_branch
      %57 = sbr.rel (%p55) target = $region29
    $region28: #{_lif_pallas.1} parent=1 // pred_region
      %58 = vst [vmem:[#allocation2] sm:$0x1] 0.0
      %59 = vst [vmem:[#allocation3] sm:$0x1] -70.0
      %60 = vst [vmem:[#allocation4] sm:$0x1] 0.0
    $region29: #{_lif_pallas.1} parent=1 // pred_fallthru
      _
    %v61 = vld [vmem:[#allocation6] sm:$0xff]
    %v62 = vld [vmem:[#allocation9] sm:$0xff]
    %v63 = vld [vmem:[#allocation9 + $0x8] sm:$0xff]
    %v64 = vld [vmem:[#allocation9 + $0x10] sm:$0xff]
    %v65 = vld [vmem:[#allocation9 + $0x18] sm:$0xff]
    %v66 = vld [vmem:[#allocation9 + $0x20] sm:$0xff]
    %v67 = vld [vmem:[#allocation9 + $0x28] sm:$0xff]
    %v68 = vld [vmem:[#allocation9 + $0x30] sm:$0xff]
    %v69 = vld [vmem:[#allocation9 + $0x38] sm:$0xff]
    %v70 = vld [vmem:[#allocation9 + $0x40] sm:$0xff]
    %v71 = vld [vmem:[#allocation9 + $0x48] sm:$0xff]
    %v72 = vld [vmem:[#allocation9 + $0x50] sm:$0xff]
    %v73 = vld [vmem:[#allocation9 + $0x58] sm:$0xff]
    %v74 = vld [vmem:[#allocation9 + $0x60] sm:$0xff]
    %v75 = vld [vmem:[#allocation9 + $0x68] sm:$0xff]
    %v76 = vld [vmem:[#allocation9 + $0x70] sm:$0xff]
    %v77 = vld [vmem:[#allocation9 + $0x78] sm:$0xff]
    %78 = vmatprep.subr.mxu0 0.0
    %79 = vmatpush1.msra.mxu0 %v77
    %80 = vmatprep.subr.mxu0 0.0
    %81 = vmatpush1.msra.mxu0 %v76
    %82 = vmatprep.subr.mxu0 0.0
    %83 = vmatpush1.msra.mxu0 %v75
    %84 = vmatprep.subr.mxu0 0.0
    %85 = vmatpush1.msra.mxu0 %v74
    %86 = vmatprep.subr.mxu0 0.0
    %87 = vmatpush1.msra.mxu0 %v73
    %88 = vmatprep.subr.mxu0 0.0
    %89 = vmatpush1.msra.mxu0 %v72
    %90 = vmatprep.subr.mxu0 0.0
    %91 = vmatpush1.msra.mxu0 %v71
    %92 = vmatprep.subr.mxu0 0.0
    %93 = vmatpush1.msra.mxu0 %v70
    %94 = vmatprep.subr.mxu0 0.0
    %95 = vmatpush1.msra.mxu0 %v69
    %96 = vmatprep.subr.mxu0 0.0
    %97 = vmatpush1.msra.mxu0 %v68
    %98 = vmatprep.subr.mxu0 0.0
    %99 = vmatpush1.msra.mxu0 %v67
    %100 = vmatprep.subr.mxu0 0.0
    %101 = vmatpush1.msra.mxu0 %v66
    %102 = vmatprep.subr.mxu0 0.0
    %103 = vmatpush1.msra.mxu0 %v65
    %104 = vmatprep.subr.mxu0 0.0
    %105 = vmatpush1.msra.mxu0 %v64
    %106 = vmatprep.subr.mxu0 0.0
    %107 = vmatpush1.msra.mxu0 %v63
    %108 = vmatprep.subr.mxu0 0.0
    %109 = vmatpush1.msra.mxu0 %v62
    %110 = vmatprep.subr.mxu0 0.0
    %111 = vmatpush2.msra.mxu0 0.0
    %112 = vmatprep.subr.mxu0 0.0
    %113 = vmatpush2.msra.mxu0 0.0
    %114 = vmatprep.subr.mxu0 0.0
    %115 = vmatpush2.msra.mxu0 0.0
    %116 = vmatprep.subr.mxu0 0.0
    %117 = vmatpush2.msra.mxu0 0.0
    %118 = vmatprep.subr.mxu0 0.0
    %119 = vmatpush2.msra.mxu0 0.0
    %120 = vmatprep.subr.mxu0 0.0
    %121 = vmatpush2.msra.mxu0 0.0
    %122 = vmatprep.subr.mxu0 0.0
    %123 = vmatpush2.msra.mxu0 0.0
    %124 = vmatprep.subr.mxu0 0.0
    %125 = vmatpush2.msra.mxu0 0.0
    %126 = vmatprep.subr.mxu0 0.0
    %127 = vmatpush2.msra.mxu0 0.0
    %128 = vmatprep.subr.mxu0 0.0
    %129 = vmatpush2.msra.mxu0 0.0
    %130 = vmatprep.subr.mxu0 0.0
    %131 = vmatpush2.msra.mxu0 0.0
    %132 = vmatprep.subr.mxu0 0.0
    %133 = vmatpush2.msra.mxu0 0.0
    %134 = vmatprep.subr.mxu0 0.0
    %135 = vmatpush2.msra.mxu0 0.0
    %136 = vmatprep.subr.mxu0 0.0
    %137 = vmatpush2.msra.mxu0 0.0
    %138 = vmatprep.subr.mxu0 0.0
    %139 = vmatpush2.msra.mxu0 0.0
    %140 = vmatprep.subr.mxu0 0.0
    %141 = vmatpush2.msra.mxu0 0.0
    %142 = vmatprep.mubr.f32.mxu0 0.0
    %143 = vmatmul.mubr.f32.gmra.mxu0 %v61
    %v144 = vpop.f32.mrf.mxu0
    %v145 = vadd.f32 0.0, %v144
    %v146 = vpop.f32.mrf.mxu0
    %147 = vdwg.mxu0
    %148 = vst [vmem:[#allocation5] sm:$0xff] %v145
    %v149 = vld [vmem:[#allocation2] sm:$0x1]
    %v150 = vld [vmem:[#allocation3] sm:$0x1]
    %v151 = vld [vmem:[#allocation4] sm:$0x1]
    %v152 = vld [vmem:[#allocation5] sm:$0xff]
    %v153 = vld [vmem:[#allocation11] sm:$0xff]
    %v154 = vld [vmem:[#allocation11 + $0x8] sm:$0xff]
    %v155 = vld [vmem:[#allocation11 + $0x10] sm:$0xff]
    %v156 = vld [vmem:[#allocation11 + $0x18] sm:$0xff]
    %v157 = vld [vmem:[#allocation11 + $0x20] sm:$0xff]
    %v158 = vld [vmem:[#allocation11 + $0x28] sm:$0xff]
    %v159 = vld [vmem:[#allocation11 + $0x30] sm:$0xff]
    %v160 = vld [vmem:[#allocation11 + $0x38] sm:$0xff]
    %v161 = vld [vmem:[#allocation11 + $0x40] sm:$0xff]
    %v162 = vld [vmem:[#allocation11 + $0x48] sm:$0xff]
    %v163 = vld [vmem:[#allocation11 + $0x50] sm:$0xff]
    %v164 = vld [vmem:[#allocation11 + $0x58] sm:$0xff]
    %v165 = vld [vmem:[#allocation11 + $0x60] sm:$0xff]
    %v166 = vld [vmem:[#allocation11 + $0x68] sm:$0xff]
    %v167 = vld [vmem:[#allocation11 + $0x70] sm:$0xff]
    %v168 = vld [vmem:[#allocation11 + $0x78] sm:$0xff]
    %169 = vmatprep.subr.mxu0 0.0
    %170 = vmatpush1.msra.mxu0 %v168
    %171 = vmatprep.subr.mxu0 0.0
    %172 = vmatpush1.msra.mxu0 %v167
    %173 = vmatprep.subr.mxu0 0.0
    %174 = vmatpush1.msra.mxu0 %v166
    %175 = vmatprep.subr.mxu0 0.0
    %176 = vmatpush1.msra.mxu0 %v165
    %177 = vmatprep.subr.mxu0 0.0
    %178 = vmatpush1.msra.mxu0 %v164
    %179 = vmatprep.subr.mxu0 0.0
    %180 = vmatpush1.msra.mxu0 %v163
    %181 = vmatprep.subr.mxu0 0.0
    %182 = vmatpush1.msra.mxu0 %v162
    %183 = vmatprep.subr.mxu0 0.0
    %184 = vmatpush1.msra.mxu0 %v161
    %185 = vmatprep.subr.mxu0 0.0
    %186 = vmatpush1.msra.mxu0 %v160
    %187 = vmatprep.subr.mxu0 0.0
    %188 = vmatpush1.msra.mxu0 %v159
    %189 = vmatprep.subr.mxu0 0.0
    %190 = vmatpush1.msra.mxu0 %v158
    %191 = vmatprep.subr.mxu0 0.0
    %192 = vmatpush1.msra.mxu0 %v157
    %193 = vmatprep.subr.mxu0 0.0
    %194 = vmatpush1.msra.mxu0 %v156
    %195 = vmatprep.subr.mxu0 0.0
    %196 = vmatpush1.msra.mxu0 %v155
    %197 = vmatprep.subr.mxu0 0.0
    %198 = vmatpush1.msra.mxu0 %v154
    %199 = vmatprep.subr.mxu0 0.0
    %200 = vmatpush1.msra.mxu0 %v153
    %201 = vmatprep.subr.mxu0 0.0
    %202 = vmatpush2.msra.mxu0 0.0
    %203 = vmatprep.subr.mxu0 0.0
    %204 = vmatpush2.msra.mxu0 0.0
    %205 = vmatprep.subr.mxu0 0.0
    %206 = vmatpush2.msra.mxu0 0.0
    %207 = vmatprep.subr.mxu0 0.0
    %208 = vmatpush2.msra.mxu0 0.0
    %209 = vmatprep.subr.mxu0 0.0
    %210 = vmatpush2.msra.mxu0 0.0
    %211 = vmatprep.subr.mxu0 0.0
    %212 = vmatpush2.msra.mxu0 0.0
    %213 = vmatprep.subr.mxu0 0.0
    %214 = vmatpush2.msra.mxu0 0.0
    %215 = vmatprep.subr.mxu0 0.0
    %216 = vmatpush2.msra.mxu0 0.0
    %217 = vmatprep.subr.mxu0 0.0
    %218 = vmatpush2.msra.mxu0 0.0
    %219 = vmatprep.subr.mxu0 0.0
    %220 = vmatpush2.msra.mxu0 0.0
    %221 = vmatprep.subr.mxu0 0.0
    %222 = vmatpush2.msra.mxu0 0.0
    %223 = vmatprep.subr.mxu0 0.0
    %224 = vmatpush2.msra.mxu0 0.0
    %225 = vmatprep.subr.mxu0 0.0
    %226 = vmatpush2.msra.mxu0 0.0
    %227 = vmatprep.subr.mxu0 0.0
    %228 = vmatpush2.msra.mxu0 0.0
    %229 = vmatprep.subr.mxu0 0.0
    %230 = vmatpush2.msra.mxu0 0.0
    %231 = vmatprep.subr.mxu0 0.0
    %232 = vmatpush2.msra.mxu0 0.0
    %233 = vmatprep.mubr.f32.mxu0 0.0
    %234 = vmatmul.mubr.f32.gmra.mxu0 %v149
    %v235 = vpop.f32.mrf.mxu0
    %v236 = vadd.f32 0.0, %v235
    %v237 = vpop.f32.mrf.mxu0
    %238 = vdwg.mxu0
    %v239 = vsub.f32 -70.0, %v150
    %v240 = vadd.f32 %v239, %v151
    %v241 = vmul.f32 %v240, 5e-05
    %v242 = vadd.f32 %v150, %v241
    %v243 = vmul.f32 %v151, -0.0001
    %v244 = vadd.f32 %v151, %v243
    %v245 = vsub.f32 %v242, -55.0
    %vm246 = vcmp.gt.f32.partialorder %v245, 0.0
    %v247 = vsel %vm246, 1, 0
    %v248 = vcvt.s32.f32 %v247
    %v249 = vsub.f32 1.0, %v248
    %v250 = vmul.f32 %v249, %v242
    %v251 = vmul.f32 %v248, -70.0
    %v252 = vadd.f32 %v250, %v251
    %v253 = vadd.f32 %v244, %v152
    %v254 = vadd.f32 %v253, %v236
    %255 = vmatprep.subr.mxu0 0.0
    %256 = vmatpush1.msra.mxu0 %v168
    %257 = vmatprep.subr.mxu0 0.0
    %258 = vmatpush1.msra.mxu0 %v167
    %259 = vmatprep.subr.mxu0 0.0
    %260 = vmatpush1.msra.mxu0 %v166
    %261 = vmatprep.subr.mxu0 0.0
    %262 = vmatpush1.msra.mxu0 %v165
    %263 = vmatprep.subr.mxu0 0.0
    %264 = vmatpush1.msra.mxu0 %v164
    %265 = vmatprep.subr.mxu0 0.0
    %266 = vmatpush1.msra.mxu0 %v163
    %267 = vmatprep.subr.mxu0 0.0
    %268 = vmatpush1.msra.mxu0 %v162
    %269 = vmatprep.subr.mxu0 0.0
    %270 = vmatpush1.msra.mxu0 %v161
    %271 = vmatprep.subr.mxu0 0.0
    %272 = vmatpush1.msra.mxu0 %v160
    %273 = vmatprep.subr.mxu0 0.0
    %274 = vmatpush1.msra.mxu0 %v159
    %275 = vmatprep.subr.mxu0 0.0
    %276 = vmatpush1.msra.mxu0 %v158
    %277 = vmatprep.subr.mxu0 0.0
    %278 = vmatpush1.msra.mxu0 %v157
    %279 = vmatprep.subr.mxu0 0.0
    %280 = vmatpush1.msra.mxu0 %v156
    %281 = vmatprep.subr.mxu0 0.0
    %282 = vmatpush1.msra.mxu0 %v155
    %283 = vmatprep.subr.mxu0 0.0
    %284 = vmatpush1.msra.mxu0 %v154
    %285 = vmatprep.subr.mxu0 0.0
    %286 = vmatpush1.msra.mxu0 %v153
    %287 = vmatprep.subr.mxu0 0.0
    %288 = vmatpush2.msra.mxu0 0.0
    %289 = vmatprep.subr.mxu0 0.0
    %290 = vmatpush2.msra.mxu0 0.0
    %291 = vmatprep.subr.mxu0 0.0
    %292 = vmatpush2.msra.mxu0 0.0
    %293 = vmatprep.subr.mxu0 0.0
    %294 = vmatpush2.msra.mxu0 0.0
    %295 = vmatprep.subr.mxu0 0.0
    %296 = vmatpush2.msra.mxu0 0.0
    %297 = vmatprep.subr.mxu0 0.0
    %298 = vmatpush2.msra.mxu0 0.0
    %299 = vmatprep.subr.mxu0 0.0
    %300 = vmatpush2.msra.mxu0 0.0
    %301 = vmatprep.subr.mxu0 0.0
    %302 = vmatpush2.msra.mxu0 0.0
    %303 = vmatprep.subr.mxu0 0.0
    %304 = vmatpush2.msra.mxu0 0.0
    %305 = vmatprep.subr.mxu0 0.0
    %306 = vmatpush2.msra.mxu0 0.0
    %307 = vmatprep.subr.mxu0 0.0
    %308 = vmatpush2.msra.mxu0 0.0
    %309 = vmatprep.subr.mxu0 0.0
    %310 = vmatpush2.msra.mxu0 0.0
    %311 = vmatprep.subr.mxu0 0.0
    %312 = vmatpush2.msra.mxu0 0.0
    %313 = vmatprep.subr.mxu0 0.0
    %314 = vmatpush2.msra.mxu0 0.0
    %315 = vmatprep.subr.mxu0 0.0
    %316 = vmatpush2.msra.mxu0 0.0
    %317 = vmatprep.subr.mxu0 0.0
    %318 = vmatpush2.msra.mxu0 0.0
    %319 = vmatprep.mubr.f32.mxu0 0.0
    %320 = vmatmul.mubr.f32.gmra.mxu0 %v248
    %v321 = vpop.f32.mrf.mxu0
    %v322 = vadd.f32 0.0, %v321
    %v323 = vpop.f32.mrf.mxu0
    %324 = vdwg.mxu0
    %v325 = vsub.f32 -70.0, %v252
    %v326 = vadd.f32 %v325, %v254
    %v327 = vmul.f32 %v326, 5e-05
    %v328 = vadd.f32 %v252, %v327
    %v329 = vmul.f32 %v254, -0.0001
    %v330 = vadd.f32 %v254, %v329
    %v331 = vsub.f32 %v328, -55.0
    %vm332 = vcmp.gt.f32.partialorder %v331, 0.0
    %v333 = vsel %vm332, 1, 0
    %v334 = vcvt.s32.f32 %v333
    %v335 = vsub.f32 1.0, %v334
    %v336 = vmul.f32 %v335, %v328
    %v337 = vmul.f32 %v334, -70.0
    %v338 = vadd.f32 %v336, %v337
    %v341 = vunpack.c.l.s4 1966171168
    %v342 = vunpack.c.0.s8 %v341
    %v343 = vlaneseq
    %v344 = vshrl.u32 %v343, 7
    %v345 = vsub.s32 %v342, %v344
    %v346 = vrot.slane %v152, %v345
    %v347 = vcombine.high %v346, %v346
    %v349 = vunpack.c.l.s4 1966171168
    %v350 = vunpack.c.0.s8 %v349
    %v351 = vlaneseq
    %v352 = vshrl.u32 %v351, 7
    %v353 = vsub.s32 %v350, %v352
    %v354 = vrot.slane %v346, %v353
    %v356 = vunpack.c.l.s4 1966171168
    %v357 = vunpack.c.0.s8 %v356
    %v358 = vlaneseq
    %v359 = vshrl.u32 %v358, 7
    %v360 = vsub.s32 %v357, %v359
    %v361 = vrot.slane %v347, %v360
    %v363 = vadd.f32 %v330, %v361
    %v364 = vadd.f32 %v363, %v322
    %365 = vmatprep.subr.mxu0 0.0
    %366 = vmatpush1.msra.mxu0 %v168
    %367 = vmatprep.subr.mxu0 0.0
    %368 = vmatpush1.msra.mxu0 %v167
    %369 = vmatprep.subr.mxu0 0.0
    %370 = vmatpush1.msra.mxu0 %v166
    %371 = vmatprep.subr.mxu0 0.0
    %372 = vmatpush1.msra.mxu0 %v165
    %373 = vmatprep.subr.mxu0 0.0
    %374 = vmatpush1.msra.mxu0 %v164
    %375 = vmatprep.subr.mxu0 0.0
    %376 = vmatpush1.msra.mxu0 %v163
    %377 = vmatprep.subr.mxu0 0.0
    %378 = vmatpush1.msra.mxu0 %v162
    %379 = vmatprep.subr.mxu0 0.0
    %380 = vmatpush1.msra.mxu0 %v161
    %381 = vmatprep.subr.mxu0 0.0
    %382 = vmatpush1.msra.mxu0 %v160
    %383 = vmatprep.subr.mxu0 0.0
    %384 = vmatpush1.msra.mxu0 %v159
    %385 = vmatprep.subr.mxu0 0.0
    %386 = vmatpush1.msra.mxu0 %v158
    %387 = vmatprep.subr.mxu0 0.0
    %388 = vmatpush1.msra.mxu0 %v157
    %389 = vmatprep.subr.mxu0 0.0
    %390 = vmatpush1.msra.mxu0 %v156
    %391 = vmatprep.subr.mxu0 0.0
    %392 = vmatpush1.msra.mxu0 %v155
    %393 = vmatprep.subr.mxu0 0.0
    %394 = vmatpush1.msra.mxu0 %v154
    %395 = vmatprep.subr.mxu0 0.0
    %396 = vmatpush1.msra.mxu0 %v153
    %397 = vmatprep.subr.mxu0 0.0
    %398 = vmatpush2.msra.mxu0 0.0
    %399 = vmatprep.subr.mxu0 0.0
    %400 = vmatpush2.msra.mxu0 0.0
    %401 = vmatprep.subr.mxu0 0.0
    %402 = vmatpush2.msra.mxu0 0.0
    %403 = vmatprep.subr.mxu0 0.0
    %404 = vmatpush2.msra.mxu0 0.0
    %405 = vmatprep.subr.mxu0 0.0
    %406 = vmatpush2.msra.mxu0 0.0
    %407 = vmatprep.subr.mxu0 0.0
    %408 = vmatpush2.msra.mxu0 0.0
    %409 = vmatprep.subr.mxu0 0.0
    %410 = vmatpush2.msra.mxu0 0.0
    %411 = vmatprep.subr.mxu0 0.0
    %412 = vmatpush2.msra.mxu0 0.0
    %413 = vmatprep.subr.mxu0 0.0
    %414 = vmatpush2.msra.mxu0 0.0
    %415 = vmatprep.subr.mxu0 0.0
    %416 = vmatpush2.msra.mxu0 0.0
    %417 = vmatprep.subr.mxu0 0.0
    %418 = vmatpush2.msra.mxu0 0.0
    %419 = vmatprep.subr.mxu0 0.0
    %420 = vmatpush2.msra.mxu0 0.0
    %421 = vmatprep.subr.mxu0 0.0
    %422 = vmatpush2.msra.mxu0 0.0
    %423 = vmatprep.subr.mxu0 0.0
    %424 = vmatpush2.msra.mxu0 0.0
    %425 = vmatprep.subr.mxu0 0.0
    %426 = vmatpush2.msra.mxu0 0.0
    %427 = vmatprep.subr.mxu0 0.0
    %428 = vmatpush2.msra.mxu0 0.0
    %429 = vmatprep.mubr.f32.mxu0 0.0
    %430 = vmatmul.mubr.f32.gmra.mxu0 %v334
    %v431 = vpop.f32.mrf.mxu0
    %v432 = vadd.f32 0.0, %v431
    %v433 = vpop.f32.mrf.mxu0
    %434 = vdwg.mxu0
    %v435 = vsub.f32 -70.0, %v338
    %v436 = vadd.f32 %v435, %v364
    %v437 = vmul.f32 %v436, 5e-05
    %v438 = vadd.f32 %v338, %v437
    %v439 = vmul.f32 %v364, -0.0001
    %v440 = vadd.f32 %v364, %v439
    %v441 = vsub.f32 %v438, -55.0
    %vm442 = vcmp.gt.f32.partialorder %v441, 0.0
    %v443 = vsel %vm442, 1, 0
    %v444 = vcvt.s32.f32 %v443
    %v445 = vsub.f32 1.0, %v444
    %v446 = vmul.f32 %v445, %v438
    %v447 = vmul.f32 %v444, -70.0
    %v448 = vadd.f32 %v446, %v447
    %v449 = vcombine.high %v354, %v354
    %v451 = vadd.f32 %v440, %v449
    %v452 = vadd.f32 %v451, %v432
    %453 = vmatprep.subr.mxu0 0.0
    %454 = vmatpush1.msra.mxu0 %v168
    %455 = vmatprep.subr.mxu0 0.0
    %456 = vmatpush1.msra.mxu0 %v167
    %457 = vmatprep.subr.mxu0 0.0
    %458 = vmatpush1.msra.mxu0 %v166
    %459 = vmatprep.subr.mxu0 0.0
    %460 = vmatpush1.msra.mxu0 %v165
    %461 = vmatprep.subr.mxu0 0.0
    %462 = vmatpush1.msra.mxu0 %v164
    %463 = vmatprep.subr.mxu0 0.0
    %464 = vmatpush1.msra.mxu0 %v163
    %465 = vmatprep.subr.mxu0 0.0
    %466 = vmatpush1.msra.mxu0 %v162
    %467 = vmatprep.subr.mxu0 0.0
    %468 = vmatpush1.msra.mxu0 %v161
    %469 = vmatprep.subr.mxu0 0.0
    %470 = vmatpush1.msra.mxu0 %v160
    %471 = vmatprep.subr.mxu0 0.0
    %472 = vmatpush1.msra.mxu0 %v159
    %473 = vmatprep.subr.mxu0 0.0
    %474 = vmatpush1.msra.mxu0 %v158
    %475 = vmatprep.subr.mxu0 0.0
    %476 = vmatpush1.msra.mxu0 %v157
    %477 = vmatprep.subr.mxu0 0.0
    %478 = vmatpush1.msra.mxu0 %v156
    %479 = vmatprep.subr.mxu0 0.0
    %480 = vmatpush1.msra.mxu0 %v155
    %481 = vmatprep.subr.mxu0 0.0
    %482 = vmatpush1.msra.mxu0 %v154
    %483 = vmatprep.subr.mxu0 0.0
    %484 = vmatpush1.msra.mxu0 %v153
    %485 = vmatprep.subr.mxu0 0.0
    %486 = vmatpush2.msra.mxu0 0.0
    %487 = vmatprep.subr.mxu0 0.0
    %488 = vmatpush2.msra.mxu0 0.0
    %489 = vmatprep.subr.mxu0 0.0
    %490 = vmatpush2.msra.mxu0 0.0
    %491 = vmatprep.subr.mxu0 0.0
    %492 = vmatpush2.msra.mxu0 0.0
    %493 = vmatprep.subr.mxu0 0.0
    %494 = vmatpush2.msra.mxu0 0.0
    %495 = vmatprep.subr.mxu0 0.0
    %496 = vmatpush2.msra.mxu0 0.0
    %497 = vmatprep.subr.mxu0 0.0
    %498 = vmatpush2.msra.mxu0 0.0
    %499 = vmatprep.subr.mxu0 0.0
    %500 = vmatpush2.msra.mxu0 0.0
    %501 = vmatprep.subr.mxu0 0.0
    %502 = vmatpush2.msra.mxu0 0.0
    %503 = vmatprep.subr.mxu0 0.0
    %504 = vmatpush2.msra.mxu0 0.0
    %505 = vmatprep.subr.mxu0 0.0
    %506 = vmatpush2.msra.mxu0 0.0
    %507 = vmatprep.subr.mxu0 0.0
    %508 = vmatpush2.msra.mxu0 0.0
    %509 = vmatprep.subr.mxu0 0.0
    %510 = vmatpush2.msra.mxu0 0.0
    %511 = vmatprep.subr.mxu0 0.0
    %512 = vmatpush2.msra.mxu0 0.0
    %513 = vmatprep.subr.mxu0 0.0
    %514 = vmatpush2.msra.mxu0 0.0
    %515 = vmatprep.subr.mxu0 0.0
    %516 = vmatpush2.msra.mxu0 0.0
    %517 = vmatprep.mubr.f32.mxu0 0.0
    %518 = vmatmul.mubr.f32.gmra.mxu0 %v444
    %v519 = vpop.f32.mrf.mxu0
    %v520 = vadd.f32 0.0, %v519
    %v521 = vpop.f32.mrf.mxu0
    %522 = vdwg.mxu0
    %v523 = vsub.f32 -70.0, %v448
    %v524 = vadd.f32 %v523, %v452
    %v525 = vmul.f32 %v524, 5e-05
    %v526 = vadd.f32 %v448, %v525
    %v527 = vmul.f32 %v452, -0.0001
    %v528 = vadd.f32 %v452, %v527
    %v529 = vsub.f32 %v526, -55.0
    %vm530 = vcmp.gt.f32.partialorder %v529, 0.0
    %v531 = vsel %vm530, 1, 0
    %v532 = vcvt.s32.f32 %v531
    %v533 = vsub.f32 1.0, %v532
    %v534 = vmul.f32 %v533, %v526
    %v535 = vmul.f32 %v532, -70.0
    %v536 = vadd.f32 %v534, %v535
    %v537 = vcombine.high %v361, %v361
    %v539 = vadd.f32 %v528, %v537
    %v540 = vadd.f32 %v539, %v520
    %541 = vmatprep.subr.mxu0 0.0
    %542 = vmatpush1.msra.mxu0 %v168
    %543 = vmatprep.subr.mxu0 0.0
    %544 = vmatpush1.msra.mxu0 %v167
    %545 = vmatprep.subr.mxu0 0.0
    %546 = vmatpush1.msra.mxu0 %v166
    %547 = vmatprep.subr.mxu0 0.0
    %548 = vmatpush1.msra.mxu0 %v165
    %549 = vmatprep.subr.mxu0 0.0
    %550 = vmatpush1.msra.mxu0 %v164
    %551 = vmatprep.subr.mxu0 0.0
    %552 = vmatpush1.msra.mxu0 %v163
    %553 = vmatprep.subr.mxu0 0.0
    %554 = vmatpush1.msra.mxu0 %v162
    %555 = vmatprep.subr.mxu0 0.0
    %556 = vmatpush1.msra.mxu0 %v161
    %557 = vmatprep.subr.mxu0 0.0
    %558 = vmatpush1.msra.mxu0 %v160
    %559 = vmatprep.subr.mxu0 0.0
    %560 = vmatpush1.msra.mxu0 %v159
    %561 = vmatprep.subr.mxu0 0.0
    %562 = vmatpush1.msra.mxu0 %v158
    %563 = vmatprep.subr.mxu0 0.0
    %564 = vmatpush1.msra.mxu0 %v157
    %565 = vmatprep.subr.mxu0 0.0
    %566 = vmatpush1.msra.mxu0 %v156
    %567 = vmatprep.subr.mxu0 0.0
    %568 = vmatpush1.msra.mxu0 %v155
    %569 = vmatprep.subr.mxu0 0.0
    %570 = vmatpush1.msra.mxu0 %v154
    %571 = vmatprep.subr.mxu0 0.0
    %572 = vmatpush1.msra.mxu0 %v153
    %573 = vmatprep.subr.mxu0 0.0
    %574 = vmatpush2.msra.mxu0 0.0
    %575 = vmatprep.subr.mxu0 0.0
    %576 = vmatpush2.msra.mxu0 0.0
    %577 = vmatprep.subr.mxu0 0.0
    %578 = vmatpush2.msra.mxu0 0.0
    %579 = vmatprep.subr.mxu0 0.0
    %580 = vmatpush2.msra.mxu0 0.0
    %581 = vmatprep.subr.mxu0 0.0
    %582 = vmatpush2.msra.mxu0 0.0
    %583 = vmatprep.subr.mxu0 0.0
    %584 = vmatpush2.msra.mxu0 0.0
    %585 = vmatprep.subr.mxu0 0.0
    %586 = vmatpush2.msra.mxu0 0.0
    %587 = vmatprep.subr.mxu0 0.0
    %588 = vmatpush2.msra.mxu0 0.0
    %589 = vmatprep.subr.mxu0 0.0
    %590 = vmatpush2.msra.mxu0 0.0
    %591 = vmatprep.subr.mxu0 0.0
    %592 = vmatpush2.msra.mxu0 0.0
    %593 = vmatprep.subr.mxu0 0.0
    %594 = vmatpush2.msra.mxu0 0.0
    %595 = vmatprep.subr.mxu0 0.0
    %596 = vmatpush2.msra.mxu0 0.0
    %597 = vmatprep.subr.mxu0 0.0
    %598 = vmatpush2.msra.mxu0 0.0
    %599 = vmatprep.subr.mxu0 0.0
    %600 = vmatpush2.msra.mxu0 0.0
    %601 = vmatprep.subr.mxu0 0.0
    %602 = vmatpush2.msra.mxu0 0.0
    %603 = vmatprep.subr.mxu0 0.0
    %604 = vmatpush2.msra.mxu0 0.0
    %605 = vmatprep.mubr.f32.mxu0 0.0
    %606 = vmatmul.mubr.f32.gmra.mxu0 %v532
    %v607 = vpop.f32.mrf.mxu0
    %v608 = vadd.f32 0.0, %v607
    %v609 = vpop.f32.mrf.mxu0
    %610 = vdwg.mxu0
    %v611 = vsub.f32 -70.0, %v536
    %v612 = vadd.f32 %v611, %v540
    %v613 = vmul.f32 %v612, 5e-05
    %v614 = vadd.f32 %v536, %v613
    %v615 = vmul.f32 %v540, -0.0001
    %v616 = vadd.f32 %v540, %v615
    %v617 = vsub.f32 %v614, -55.0
    %vm618 = vcmp.gt.f32.partialorder %v617, 0.0
    %v619 = vsel %vm618, 1, 0
    %v620 = vcvt.s32.f32 %v619
    %v621 = vsub.f32 1.0, %v620
    %v622 = vmul.f32 %v621, %v614
    %v623 = vmul.f32 %v620, -70.0
    %v624 = vadd.f32 %v622, %v623
    %v625 = vcombine.high %v152, %v152
    %v627 = vunpack.c.l.s4 1966171168
    %v628 = vunpack.c.0.s8 %v627
    %v629 = vlaneseq
    %v630 = vshrl.u32 %v629, 7
    %v631 = vsub.s32 %v628, %v630
    %v632 = vrot.slane %v625, %v631
    %v634 = vunpack.c.l.s4 1966171168
    %v635 = vunpack.c.0.s8 %v634
    %v636 = vlaneseq
    %v637 = vshrl.u32 %v636, 7
    %v638 = vsub.s32 %v635, %v637
    %v639 = vrot.slane %v632, %v638
    %v641 = vadd.f32 %v616, %v639
    %v642 = vadd.f32 %v641, %v608
    %643 = vmatprep.subr.mxu0 0.0
    %644 = vmatpush1.msra.mxu0 %v168
    %645 = vmatprep.subr.mxu0 0.0
    %646 = vmatpush1.msra.mxu0 %v167
    %647 = vmatprep.subr.mxu0 0.0
    %648 = vmatpush1.msra.mxu0 %v166
    %649 = vmatprep.subr.mxu0 0.0
    %650 = vmatpush1.msra.mxu0 %v165
    %651 = vmatprep.subr.mxu0 0.0
    %652 = vmatpush1.msra.mxu0 %v164
    %653 = vmatprep.subr.mxu0 0.0
    %654 = vmatpush1.msra.mxu0 %v163
    %655 = vmatprep.subr.mxu0 0.0
    %656 = vmatpush1.msra.mxu0 %v162
    %657 = vmatprep.subr.mxu0 0.0
    %658 = vmatpush1.msra.mxu0 %v161
    %659 = vmatprep.subr.mxu0 0.0
    %660 = vmatpush1.msra.mxu0 %v160
    %661 = vmatprep.subr.mxu0 0.0
    %662 = vmatpush1.msra.mxu0 %v159
    %663 = vmatprep.subr.mxu0 0.0
    %664 = vmatpush1.msra.mxu0 %v158
    %665 = vmatprep.subr.mxu0 0.0
    %666 = vmatpush1.msra.mxu0 %v157
    %667 = vmatprep.subr.mxu0 0.0
    %668 = vmatpush1.msra.mxu0 %v156
    %669 = vmatprep.subr.mxu0 0.0
    %670 = vmatpush1.msra.mxu0 %v155
    %671 = vmatprep.subr.mxu0 0.0
    %672 = vmatpush1.msra.mxu0 %v154
    %673 = vmatprep.subr.mxu0 0.0
    %674 = vmatpush1.msra.mxu0 %v153
    %675 = vmatprep.subr.mxu0 0.0
    %676 = vmatpush2.msra.mxu0 0.0
    %677 = vmatprep.subr.mxu0 0.0
    %678 = vmatpush2.msra.mxu0 0.0
    %679 = vmatprep.subr.mxu0 0.0
    %680 = vmatpush2.msra.mxu0 0.0
    %681 = vmatprep.subr.mxu0 0.0
    %682 = vmatpush2.msra.mxu0 0.0
    %683 = vmatprep.subr.mxu0 0.0
    %684 = vmatpush2.msra.mxu0 0.0
    %685 = vmatprep.subr.mxu0 0.0
    %686 = vmatpush2.msra.mxu0 0.0
    %687 = vmatprep.subr.mxu0 0.0
    %688 = vmatpush2.msra.mxu0 0.0
    %689 = vmatprep.subr.mxu0 0.0
    %690 = vmatpush2.msra.mxu0 0.0
    %691 = vmatprep.subr.mxu0 0.0
    %692 = vmatpush2.msra.mxu0 0.0
    %693 = vmatprep.subr.mxu0 0.0
    %694 = vmatpush2.msra.mxu0 0.0
    %695 = vmatprep.subr.mxu0 0.0
    %696 = vmatpush2.msra.mxu0 0.0
    %697 = vmatprep.subr.mxu0 0.0
    %698 = vmatpush2.msra.mxu0 0.0
    %699 = vmatprep.subr.mxu0 0.0
    %700 = vmatpush2.msra.mxu0 0.0
    %701 = vmatprep.subr.mxu0 0.0
    %702 = vmatpush2.msra.mxu0 0.0
    %703 = vmatprep.subr.mxu0 0.0
    %704 = vmatpush2.msra.mxu0 0.0
    %705 = vmatprep.subr.mxu0 0.0
    %706 = vmatpush2.msra.mxu0 0.0
    %707 = vmatprep.mubr.f32.mxu0 0.0
    %708 = vmatmul.mubr.f32.gmra.mxu0 %v620
    %v709 = vpop.f32.mrf.mxu0
    %v710 = vadd.f32 0.0, %v709
    %v711 = vpop.f32.mrf.mxu0
    %712 = vdwg.mxu0
    %v713 = vsub.f32 -70.0, %v624
    %v714 = vadd.f32 %v713, %v642
    %v715 = vmul.f32 %v714, 5e-05
    %v716 = vadd.f32 %v624, %v715
    %v717 = vmul.f32 %v642, -0.0001
    %v718 = vadd.f32 %v642, %v717
    %v719 = vsub.f32 %v716, -55.0
    %vm720 = vcmp.gt.f32.partialorder %v719, 0.0
    %v721 = vsel %vm720, 1, 0
    %v722 = vcvt.s32.f32 %v721
    %v723 = vsub.f32 1.0, %v722
    %v724 = vmul.f32 %v723, %v716
    %v725 = vmul.f32 %v722, -70.0
    %v726 = vadd.f32 %v724, %v725
    %v727 = vcombine.high %v632, %v632
    %v729 = vunpack.c.l.s4 1966171168
    %v730 = vunpack.c.0.s8 %v729
    %v731 = vlaneseq
    %v732 = vshrl.u32 %v731, 7
    %v733 = vsub.s32 %v730, %v732
    %v734 = vrot.slane %v727, %v733
    %v736 = vadd.f32 %v718, %v734
    %v737 = vadd.f32 %v736, %v710
    %738 = vmatprep.subr.mxu0 0.0
    %739 = vmatpush1.msra.mxu0 %v168
    %740 = vmatprep.subr.mxu0 0.0
    %741 = vmatpush1.msra.mxu0 %v167
    %742 = vmatprep.subr.mxu0 0.0
    %743 = vmatpush1.msra.mxu0 %v166
    %744 = vmatprep.subr.mxu0 0.0
    %745 = vmatpush1.msra.mxu0 %v165
    %746 = vmatprep.subr.mxu0 0.0
    %747 = vmatpush1.msra.mxu0 %v164
    %748 = vmatprep.subr.mxu0 0.0
    %749 = vmatpush1.msra.mxu0 %v163
    %750 = vmatprep.subr.mxu0 0.0
    %751 = vmatpush1.msra.mxu0 %v162
    %752 = vmatprep.subr.mxu0 0.0
    %753 = vmatpush1.msra.mxu0 %v161
    %754 = vmatprep.subr.mxu0 0.0
    %755 = vmatpush1.msra.mxu0 %v160
    %756 = vmatprep.subr.mxu0 0.0
    %757 = vmatpush1.msra.mxu0 %v159
    %758 = vmatprep.subr.mxu0 0.0
    %759 = vmatpush1.msra.mxu0 %v158
    %760 = vmatprep.subr.mxu0 0.0
    %761 = vmatpush1.msra.mxu0 %v157
    %762 = vmatprep.subr.mxu0 0.0
    %763 = vmatpush1.msra.mxu0 %v156
    %764 = vmatprep.subr.mxu0 0.0
    %765 = vmatpush1.msra.mxu0 %v155
    %766 = vmatprep.subr.mxu0 0.0
    %767 = vmatpush1.msra.mxu0 %v154
    %768 = vmatprep.subr.mxu0 0.0
    %769 = vmatpush1.msra.mxu0 %v153
    %770 = vmatprep.subr.mxu0 0.0
    %771 = vmatpush2.msra.mxu0 0.0
    %772 = vmatprep.subr.mxu0 0.0
    %773 = vmatpush2.msra.mxu0 0.0
    %774 = vmatprep.subr.mxu0 0.0
    %775 = vmatpush2.msra.mxu0 0.0
    %776 = vmatprep.subr.mxu0 0.0
    %777 = vmatpush2.msra.mxu0 0.0
    %778 = vmatprep.subr.mxu0 0.0
    %779 = vmatpush2.msra.mxu0 0.0
    %780 = vmatprep.subr.mxu0 0.0
    %781 = vmatpush2.msra.mxu0 0.0
    %782 = vmatprep.subr.mxu0 0.0
    %783 = vmatpush2.msra.mxu0 0.0
    %784 = vmatprep.subr.mxu0 0.0
    %785 = vmatpush2.msra.mxu0 0.0
    %786 = vmatprep.subr.mxu0 0.0
    %787 = vmatpush2.msra.mxu0 0.0
    %788 = vmatprep.subr.mxu0 0.0
    %789 = vmatpush2.msra.mxu0 0.0
    %790 = vmatprep.subr.mxu0 0.0
    %791 = vmatpush2.msra.mxu0 0.0
    %792 = vmatprep.subr.mxu0 0.0
    %793 = vmatpush2.msra.mxu0 0.0
    %794 = vmatprep.subr.mxu0 0.0
    %795 = vmatpush2.msra.mxu0 0.0
    %796 = vmatprep.subr.mxu0 0.0
    %797 = vmatpush2.msra.mxu0 0.0
    %798 = vmatprep.subr.mxu0 0.0
    %799 = vmatpush2.msra.mxu0 0.0
    %800 = vmatprep.subr.mxu0 0.0
    %801 = vmatpush2.msra.mxu0 0.0
    %802 = vmatprep.mubr.f32.mxu0 0.0
    %803 = vmatmul.mubr.f32.gmra.mxu0 %v722
    %v804 = vpop.f32.mrf.mxu0
    %v805 = vadd.f32 0.0, %v804
    %v806 = vpop.f32.mrf.mxu0
    %807 = vdwg.mxu0
    %v808 = vsub.f32 -70.0, %v726
    %v809 = vadd.f32 %v808, %v737
    %v810 = vmul.f32 %v809, 5e-05
    %v811 = vadd.f32 %v726, %v810
    %v812 = vmul.f32 %v737, -0.0001
    %v813 = vadd.f32 %v737, %v812
    %v814 = vsub.f32 %v811, -55.0
    %vm815 = vcmp.gt.f32.partialorder %v814, 0.0
    %v816 = vsel %vm815, 1, 0
    %v817 = vcvt.s32.f32 %v816
    %v818 = vsub.f32 1.0, %v817
    %v819 = vmul.f32 %v818, %v811
    %v820 = vmul.f32 %v817, -70.0
    %v821 = vadd.f32 %v819, %v820
    %v822 = vcombine.high %v639, %v639
    %v824 = vadd.f32 %v813, %v822
    %v825 = vadd.f32 %v824, %v805
    %826 = vmatprep.subr.mxu0 0.0
    %827 = vmatpush1.msra.mxu0 %v168
    %828 = vmatprep.subr.mxu0 0.0
    %829 = vmatpush1.msra.mxu0 %v167
    %830 = vmatprep.subr.mxu0 0.0
    %831 = vmatpush1.msra.mxu0 %v166
    %832 = vmatprep.subr.mxu0 0.0
    %833 = vmatpush1.msra.mxu0 %v165
    %834 = vmatprep.subr.mxu0 0.0
    %835 = vmatpush1.msra.mxu0 %v164
    %836 = vmatprep.subr.mxu0 0.0
    %837 = vmatpush1.msra.mxu0 %v163
    %838 = vmatprep.subr.mxu0 0.0
    %839 = vmatpush1.msra.mxu0 %v162
    %840 = vmatprep.subr.mxu0 0.0
    %841 = vmatpush1.msra.mxu0 %v161
    %842 = vmatprep.subr.mxu0 0.0
    %843 = vmatpush1.msra.mxu0 %v160
    %844 = vmatprep.subr.mxu0 0.0
    %845 = vmatpush1.msra.mxu0 %v159
    %846 = vmatprep.subr.mxu0 0.0
    %847 = vmatpush1.msra.mxu0 %v158
    %848 = vmatprep.subr.mxu0 0.0
    %849 = vmatpush1.msra.mxu0 %v157
    %850 = vmatprep.subr.mxu0 0.0
    %851 = vmatpush1.msra.mxu0 %v156
    %852 = vmatprep.subr.mxu0 0.0
    %853 = vmatpush1.msra.mxu0 %v155
    %854 = vmatprep.subr.mxu0 0.0
    %855 = vmatpush1.msra.mxu0 %v154
    %856 = vmatprep.subr.mxu0 0.0
    %857 = vmatpush1.msra.mxu0 %v153
    %858 = vmatprep.subr.mxu0 0.0
    %859 = vmatpush2.msra.mxu0 0.0
    %860 = vmatprep.subr.mxu0 0.0
    %861 = vmatpush2.msra.mxu0 0.0
    %862 = vmatprep.subr.mxu0 0.0
    %863 = vmatpush2.msra.mxu0 0.0
    %864 = vmatprep.subr.mxu0 0.0
    %865 = vmatpush2.msra.mxu0 0.0
    %866 = vmatprep.subr.mxu0 0.0
    %867 = vmatpush2.msra.mxu0 0.0
    %868 = vmatprep.subr.mxu0 0.0
    %869 = vmatpush2.msra.mxu0 0.0
    %870 = vmatprep.subr.mxu0 0.0
    %871 = vmatpush2.msra.mxu0 0.0
    %872 = vmatprep.subr.mxu0 0.0
    %873 = vmatpush2.msra.mxu0 0.0
    %874 = vmatprep.subr.mxu0 0.0
    %875 = vmatpush2.msra.mxu0 0.0
    %876 = vmatprep.subr.mxu0 0.0
    %877 = vmatpush2.msra.mxu0 0.0
    %878 = vmatprep.subr.mxu0 0.0
    %879 = vmatpush2.msra.mxu0 0.0
    %880 = vmatprep.subr.mxu0 0.0
    %881 = vmatpush2.msra.mxu0 0.0
    %882 = vmatprep.subr.mxu0 0.0
    %883 = vmatpush2.msra.mxu0 0.0
    %884 = vmatprep.subr.mxu0 0.0
    %885 = vmatpush2.msra.mxu0 0.0
    %886 = vmatprep.subr.mxu0 0.0
    %887 = vmatpush2.msra.mxu0 0.0
    %888 = vmatprep.subr.mxu0 0.0
    %889 = vmatpush2.msra.mxu0 0.0
    %890 = vmatprep.mubr.f32.mxu0 0.0
    %891 = vmatmul.mubr.f32.gmra.mxu0 %v817
    %v892 = vpop.f32.mrf.mxu0
    %v893 = vadd.f32 0.0, %v892
    %v894 = vpop.f32.mrf.mxu0
    %895 = vdwg.mxu0
    %v896 = vsub.f32 -70.0, %v821
    %v897 = vadd.f32 %v896, %v825
    %v898 = vmul.f32 %v897, 5e-05
    %v899 = vadd.f32 %v821, %v898
    %v900 = vmul.f32 %v825, -0.0001
    %v901 = vadd.f32 %v825, %v900
    %v902 = vsub.f32 %v899, -55.0
    %vm903 = vcmp.gt.f32.partialorder %v902, 0.0
    %v904 = vsel %vm903, 1, 0
    %v905 = vcvt.s32.f32 %v904
    %v906 = vsub.f32 1.0, %v905
    %v907 = vmul.f32 %v906, %v899
    %v908 = vmul.f32 %v905, -70.0
    %v909 = vadd.f32 %v907, %v908
    %v910 = vcombine.high %v734, %v734
    %v912 = vadd.f32 %v901, %v910
    %v913 = vadd.f32 %v912, %v893
    %v915 = vlaneseq
    %v916 = vshrl.u32 %v915, 7
    %v917 = vsub.s32 0, %v916
    %v918 = vrot.slane %v334, %v917
    %v921 = vlaneseq
    %v922 = vshrl.u32 %v921, 7
    %v923 = vsub.s32 0, %v922
    %v924 = vrot.slane %v444, %v923
    %v927 = vlaneseq
    %v928 = vshrl.u32 %v927, 7
    %v929 = vsub.s32 0, %v928
    %v930 = vrot.slane %v532, %v929
    %v933 = vlaneseq
    %v934 = vshrl.u32 %v933, 7
    %v935 = vsub.s32 0, %v934
    %v936 = vrot.slane %v620, %v935
    %v939 = vlaneseq
    %v940 = vshrl.u32 %v939, 7
    %v941 = vsub.s32 0, %v940
    %v942 = vrot.slane %v722, %v941
    %v945 = vlaneseq
    %v946 = vshrl.u32 %v945, 7
    %v947 = vsub.s32 0, %v946
    %v948 = vrot.slane %v817, %v947
    %v951 = vlaneseq
    %v952 = vshrl.u32 %v951, 7
    %v953 = vsub.s32 0, %v952
    %v954 = vrot.slane %v905, %v953
    %vm956 = vcmask 1040384
    %v957 = vsel %vm956, %v248, %v918
    %vm958 = vcmask 1041408
    %v959 = vsel %vm958, %v957, %v924
    %vm960 = vcmask 1042432
    %v961 = vsel %vm960, %v959, %v930
    %vm962 = vcmask 1043456
    %v963 = vsel %vm962, %v961, %v936
    %vm964 = vcmask 1044480
    %v965 = vsel %vm964, %v963, %v942
    %vm966 = vcmask 1045504
    %v967 = vsel %vm966, %v965, %v948
    %vm968 = vcmask 1046528
    %v969 = vsel %vm968, %v967, %v954
    %970 = vst [vmem:[#allocation12] sm:$0xff] %v969
    %971 = vst [vmem:[#allocation2] sm:$0x1] %v905
    %972 = vst [vmem:[#allocation3] sm:$0x1] %v909
    %973 = vst [vmem:[#allocation4] sm:$0x1] %v913
    // Predicated region
    $region30: #{_lif_pallas.1} parent=1 // pred_check
      _
    $region31: #{_lif_pallas.1} parent=1 // pred_check_branch
      %975 = sbr.rel (0) target = $region33
    $region32: #{_lif_pallas.1} parent=1 // pred_region
      %s977 = ssub.s32 128, 128
      %978 = vsyncadd [#allocation8], %s977
      %s980 = sshll.u32 [#allocation12], 4
      %s981 = int_to_ptr.vmem [resolvable:$true] %s980
      %983 = dma.vmem_to_hbm [thread:$0]  %s981, 128, %s3, [#allocation8]
    $region33: #{_lif_pallas.1} parent=1 // pred_fallthru
      _
    // Predicated region
    $region34: #{_lif_pallas.1} parent=1 // pred_check
      _
    $region35: #{_lif_pallas.1} parent=1 // pred_check_branch
      %985 = sbr.rel (0) target = $region37
    $region36: #{_lif_pallas.1} parent=1 // pred_region
      %986 = dma.done [#allocation8], 128
    $region37: #{_lif_pallas.1} parent=1 // pred_fallthru
      _
    %987 = vsyncpa [#allocation7], 1
    %988 = vsyncpa [#allocation10], 1
    %989 = vsyncpa [#allocation8], 1

</llo_original>
